<compile_context>
chip_gen: v6e
topology: v6e:2x2x1
jax: 0.10.0
libtpu: 0.0.40
codegen_flags: <defaults>
</compile_context>

<pallas_src>
import jax
import jax.numpy as jnp
from jax import lax
from jax.experimental import pallas as pl
from jax.experimental.pallas import tpu as pltpu


# ---------------------------------------------------------------------------
# Kernel
# ---------------------------------------------------------------------------
def _transformer_conv(x, adj_mask, w, b):
    """One PyG TransformerConv layer with fused Q/K/V/skip projection.

    x        : [N, C_in_pad]  (padded input cols are zero)
    adj_mask : [N, N] f32 {0, 1}, adj_mask[dst, src] = 1
    w        : [C_in_pad, 4*C_out] = [Wq | Wk | Wv | Wskip] (pre-transposed)
    b        : [1, 4*C_out]        = [bq | bk | bv | bskip]
    """
    c_out = w.shape[1] // 4
    proj = jnp.dot(x, w, preferred_element_type=jnp.float32) + b          # [N, 4*C_out]

    q = proj[:, 0:c_out] * (1.0 / jnp.sqrt(jnp.float32(c_out)))           # scale folded into q
    k = proj[:, c_out:2 * c_out]
    v = proj[:, 2 * c_out:3 * c_out]
    skip = proj[:, 3 * c_out:4 * c_out]

    # scores[i, j] = <q_i, k_j> / sqrt(C_out) (i = target, j = source);
    # contraction on dim 1 of both operands -- no explicit transpose.
    scores = lax.dot_general(q, k, (((1,), (1,)), ((), ())),
                             preferred_element_type=jnp.float32)          # [N, N]

    # Additive -1e30 bias for non-edges, then multiplicative re-zeroing.
    masked = scores + (adj_mask - 1.0) * jnp.float32(1e30)
    row_max = jnp.max(masked, axis=-1, keepdims=True)
    e = jnp.exp(masked - row_max) * adj_mask                              # exact 0 off-edge
    denom = jnp.sum(e, axis=-1, keepdims=True)
    # Rows with no incoming edge: e == 0 everywhere -> agg == 0 regardless of inv.
    inv = pl.reciprocal(jnp.where(denom > 0.0, denom, 1.0), approx=True)
    agg = jnp.dot(e, v, preferred_element_type=jnp.float32) * inv         # [N, C_out]
    return agg + skip


def gnn_kernel(data_ref, w_ref, out_ref):
    # ---- per-graph data slab [1, 40, 128] ----
    xp = data_ref[0, 0:16, 0:16]        # node features, cols 9:16 zero-padded
    adj = data_ref[0, 16:32, 0:16]      # f32 {0,1} mask, adj[dst, src]
    pool = data_ref[0, 32:40, 0:16]     # mean-pool matrix, rows >= B zero

    # ---- weight slab [160, 128], static 8-aligned slices ----
    w1 = w_ref[0:16, 0:64]              # conv1 fused [Wq|Wk|Wv|Wskip], rows 9:16 zero
    w2 = w_ref[16:32, :]                # conv2 fused                  [16, 128]
    wfc1 = w_ref[32:64, 0:64]           # fc1.T                        [32, 64]
    wfc2 = w_ref[64:128, :]             # fc2.T zero-padded            [64, 128]
    b1 = w_ref[128:129, 0:64]           # conv1 fused bias
    b2 = w_ref[136:137, :]              # conv2 fused bias
    bf1 = w_ref[144:145, 0:64]          # fc1 bias
    bf2 = w_ref[152:153, :]             # fc2 bias zero-padded to 128 lanes

    h1 = jax.nn.relu(_transformer_conv(xp, adj, w1, b1))                  # [16, 16]
    h2 = jax.nn.relu(_transformer_conv(h1, adj, w2, b2))                  # [16, 32]

    g = jnp.dot(pool, h2, preferred_element_type=jnp.float32)             # [8, 32]
    f1 = jax.nn.relu(jnp.dot(g, wfc1, preferred_element_type=jnp.float32) + bf1)   # [8, 64]
    logits = jnp.dot(f1, wfc2, preferred_element_type=jnp.float32) + bf2  # [8, 128] lane-dense
    out_ref[0] = jax.nn.sigmoid(logits)


def gnn_forward(data_all, w_slab, num_graphs):
    """data_all: [G, 40, 128] packed per-graph slabs; w_slab: [160, 128]."""
    G = data_all.shape[0]
    out = pl.pallas_call(
        gnn_kernel,
        out_shape=jax.ShapeDtypeStruct((G, 8, 128), jnp.float32),
        grid=(G,),
        in_specs=[
            pl.BlockSpec((1, 40, 128), lambda g: (g, 0, 0)),   # per-graph data
            pl.BlockSpec((160, 128), lambda g: (0, 0)),        # weights, resident
        ],
        out_specs=pl.BlockSpec((1, 8, 128), lambda g: (g, 0, 0)),
        compiler_params=pltpu.CompilerParams(
            dimension_semantics=("parallel",)),
    )(data_all, w_slab)
    return out[:, :num_graphs, :2]                              # lane-dense store, slice here


# ---------------------------------------------------------------------------
# Parameters (torch-style init), packing, and a pure-JAX reference
# ---------------------------------------------------------------------------
def _linear_params(key, out_f, in_f):
    kw, kb = jax.random.split(key)
    bound = 1.0 / float(in_f) ** 0.5
    w = jax.random.uniform(kw, (out_f, in_f), jnp.float32, -bound, bound)  # torch [out, in]
    b = jax.random.uniform(kb, (out_f,), jnp.float32, -bound, bound)
    return w, b


def make_params(key):
    ks = jax.random.split(key, 10)
    conv1 = sum([_linear_params(ks[i], 16, 9) for i in range(4)], ())      # q,k,v,skip
    conv2 = sum([_linear_params(ks[4 + i], 32, 16) for i in range(4)], ())
    fc1 = _linear_params(ks[8], 64, 32)
    fc2 = _linear_params(ks[9], 2, 64)
    return {"conv1": conv1, "conv2": conv2, "fc1": fc1, "fc2": fc2}


def pack_weights(p):
    wq1, bq1, wk1, bk1, wv1, bv1, ws1, bs1 = p["conv1"]
    wq2, bq2, wk2, bk2, wv2, bv2, ws2, bs2 = p["conv2"]
    wfc1, bfc1 = p["fc1"]
    wfc2, bfc2 = p["fc2"]

    w1 = jnp.concatenate([wq1.T, wk1.T, wv1.T, ws1.T], axis=1)             # [9, 64]
    w2 = jnp.concatenate([wq2.T, wk2.T, wv2.T, ws2.T], axis=1)             # [16, 128]
    b1 = jnp.concatenate([bq1, bk1, bv1, bs1])                             # [64]
    b2 = jnp.concatenate([bq2, bk2, bv2, bs2])                             # [128]

    slab = jnp.zeros((160, 128), jnp.float32)
    slab = slab.at[0:9, 0:64].set(w1)
    slab = slab.at[16:32, 0:128].set(w2)
    slab = slab.at[32:64, 0:64].set(wfc1.T)
    slab = slab.at[64:128, 0:2].set(wfc2.T)
    slab = slab.at[128, 0:64].set(b1)
    slab = slab.at[136, 0:128].set(b2)
    slab = slab.at[144, 0:64].set(bfc1)
    slab = slab.at[152, 0:2].set(bfc2)
    return slab


def pack_graph(x, adj, pool):
    """x: [16, 9], adj: [16, 16] f32 mask, pool: [B<=8, 16] -> [40, 128] slab."""
    slab = jnp.zeros((40, 128), jnp.float32)
    slab = slab.at[0:16, 0:9].set(x)
    slab = slab.at[16:32, 0:16].set(adj)
    slab = slab.at[32:32 + pool.shape[0], 0:16].set(pool)
    return slab


def reference_forward(x, adj, pool, p):
    def linear(h, w, b):
        return h @ w.T + b

    def conv(h, wq, bq, wk, bk, wv, bv, ws, bs):
        q, k = linear(h, wq, bq), linear(h, wk, bk)
        v, skip = linear(h, wv, bv), linear(h, ws, bs)
        c = q.shape[-1]
        scores = (q @ k.T) / jnp.sqrt(jnp.float32(c))
        mask = adj > 0
        alpha = jax.nn.softmax(jnp.where(mask, scores, -1e30), axis=-1)
        alpha = jnp.where(mask, alpha, 0.0)
        return alpha @ v + skip

    h1 = jax.nn.relu(conv(x, *p["conv1"]))
    h2 = jax.nn.relu(conv(h1, *p["conv2"]))
    g = pool @ h2
    f1 = jax.nn.relu(linear(g, *p["fc1"]))
    return jax.nn.sigmoid(linear(f1, *p["fc2"]))


# ---------------------------------------------------------------------------
if __name__ == "__main__":
    key = jax.random.PRNGKey(0)
    k_x, k_p = jax.random.split(key)

    # G graph-batches, each with B=2 graphs of 8 nodes (N=16 nodes), 9 features.
    N, F, B, nodes_per_graph, G = 16, 9, 2, 8, 4

    # Deterministic edges: bidirectional ring inside each graph (PyG layout:
    # row 0 = source, row 1 = target).
    src, dst = [], []
    for gph in range(B):
        off = gph * nodes_per_graph
        for i in range(nodes_per_graph):
            j = (i + 1) % nodes_per_graph
            src += [off + i, off + j]
            dst += [off + j, off + i]
    edge_index = jnp.array([src, dst], dtype=jnp.int32)
    adj = jnp.zeros((N, N), jnp.float32).at[edge_index[1], edge_index[0]].set(1.0)

    # Batch vector -> row-normalized mean-pool matrix [B, N].
    batch = jnp.repeat(jnp.arange(B, dtype=jnp.int32), nodes_per_graph)
    onehot = (batch[None, :] == jnp.arange(B, dtype=jnp.int32)[:, None]).astype(jnp.float32)
    pool = onehot / jnp.sum(onehot, axis=1, keepdims=True)

    params = make_params(k_p)
    w_slab = pack_weights(params)

    x_all = jax.random.normal(k_x, (G, N, F), jnp.float32)
    data_all = jnp.stack([pack_graph(x_all[g], adj, pool) for g in range(G)])  # [G, 40, 128]

    out = gnn_forward(data_all, w_slab, num_graphs=B)                          # [G, B, 2]
    out = jax.block_until_ready(out)

    ref = jnp.stack([reference_forward(x_all[g], adj, pool, params) for g in range(G)])

    assert out.shape == (G, B, 2) and out.dtype == jnp.float32
    assert bool(jnp.all(jnp.isfinite(out)))
    assert bool(jnp.allclose(out, ref, atol=3e-3, rtol=3e-3))
    print("KERNEL_OK")
</pallas_src>

<mosaic_0001>
module attributes {stable_mosaic.version = 11 : i64} {
  func.func @gnn_kernel(%arg0: i32, %arg1: memref<1x40x128xf32, #tpu.memory_space<vmem>>, %arg2: memref<160x128xf32, #tpu.memory_space<vmem>>, %arg3: memref<1x8x128xf32, #tpu.memory_space<vmem>>) attributes {dimension_semantics = [#tpu.dimension_semantics<parallel>], iteration_bounds = array<i64: 4>, scalar_prefetch = 0 : i64, scratch_operands = 0 : i64, tpu.core_type = #tpu.core_type<tc>, window_params = [{transform_indices = @transform_0, window_bounds = array<i64: 1, 40, 128>}, {pipeline_mode = #tpu.pipeline_mode<synchronous>, transform_indices = @transform_1, window_bounds = array<i64: 160, 128>}, {transform_indices = @transform_2, window_bounds = array<i64: 1, 8, 128>}]} {
    %c0 = arith.constant 0 : index
    %c0_0 = arith.constant 0 : index
    %c0_1 = arith.constant 0 : index
    %0 = vector.load %arg1[%c0, %c0_0, %c0_1] : memref<1x40x128xf32, #tpu.memory_space<vmem>>, vector<1x16x16xf32>
    %1 = vector.shape_cast %0 : vector<1x16x16xf32> to vector<16x16xf32>
    %c0_2 = arith.constant 0 : index
    %c16 = arith.constant 16 : index
    %c0_3 = arith.constant 0 : index
    %2 = vector.load %arg1[%c0_2, %c16, %c0_3] : memref<1x40x128xf32, #tpu.memory_space<vmem>>, vector<1x16x16xf32>
    %3 = vector.shape_cast %2 : vector<1x16x16xf32> to vector<16x16xf32>
    %c0_4 = arith.constant 0 : index
    %c32 = arith.constant 32 : index
    %c0_5 = arith.constant 0 : index
    %4 = vector.load %arg1[%c0_4, %c32, %c0_5] : memref<1x40x128xf32, #tpu.memory_space<vmem>>, vector<1x8x16xf32>
    %5 = vector.shape_cast %4 : vector<1x8x16xf32> to vector<8x16xf32>
    %c0_6 = arith.constant 0 : index
    %c0_7 = arith.constant 0 : index
    %6 = vector.load %arg2[%c0_6, %c0_7] : memref<160x128xf32, #tpu.memory_space<vmem>>, vector<16x64xf32>
    %c16_8 = arith.constant 16 : index
    %c0_9 = arith.constant 0 : index
    %7 = vector.load %arg2[%c16_8, %c0_9] : memref<160x128xf32, #tpu.memory_space<vmem>>, vector<16x128xf32>
    %c32_10 = arith.constant 32 : index
    %c0_11 = arith.constant 0 : index
    %8 = vector.load %arg2[%c32_10, %c0_11] : memref<160x128xf32, #tpu.memory_space<vmem>>, vector<32x64xf32>
    %c64 = arith.constant 64 : index
    %c0_12 = arith.constant 0 : index
    %9 = vector.load %arg2[%c64, %c0_12] : memref<160x128xf32, #tpu.memory_space<vmem>>, vector<64x128xf32>
    %c128 = arith.constant 128 : index
    %c0_13 = arith.constant 0 : index
    %10 = vector.load %arg2[%c128, %c0_13] : memref<160x128xf32, #tpu.memory_space<vmem>>, vector<1x64xf32>
    %c136 = arith.constant 136 : index
    %c0_14 = arith.constant 0 : index
    %11 = vector.load %arg2[%c136, %c0_14] : memref<160x128xf32, #tpu.memory_space<vmem>>, vector<1x128xf32>
    %c144 = arith.constant 144 : index
    %c0_15 = arith.constant 0 : index
    %12 = vector.load %arg2[%c144, %c0_15] : memref<160x128xf32, #tpu.memory_space<vmem>>, vector<1x64xf32>
    %c152 = arith.constant 152 : index
    %c0_16 = arith.constant 0 : index
    %13 = vector.load %arg2[%c152, %c0_16] : memref<160x128xf32, #tpu.memory_space<vmem>>, vector<1x128xf32>
    %cst = arith.constant dense<0.000000e+00> : vector<16x64xf32>
    %14 = tpu.matmul %1, %6, %cst {dimension_numbers = #tpu.dot_dimension_numbers<[1], [0], [0], [1], [0, 0, 1, 1], [], []>} : vector<16x16xf32>, vector<16x64xf32>, vector<16x64xf32> -> vector<16x64xf32>
    %15 = vector.broadcast %10 : vector<1x64xf32> to vector<16x64xf32>
    %16 = arith.addf %14, %15 : vector<16x64xf32>
    %17 = vector.extract_strided_slice %16 {offsets = [0, 0], sizes = [16, 16], strides = [1, 1]} : vector<16x64xf32> to vector<16x16xf32>
    %cst_17 = arith.constant 1.600000e+01 : f32
    %18 = math.sqrt %cst_17 : f32
    %cst_18 = arith.constant 1.000000e+00 : f32
    %19 = arith.divf %cst_18, %18 : f32
    %20 = vector.broadcast %19 : f32 to vector<16x16xf32>
    %21 = arith.mulf %17, %20 : vector<16x16xf32>
    %22 = vector.extract_strided_slice %16 {offsets = [0, 16], sizes = [16, 16], strides = [1, 1]} : vector<16x64xf32> to vector<16x16xf32>
    %23 = vector.extract_strided_slice %16 {offsets = [0, 32], sizes = [16, 16], strides = [1, 1]} : vector<16x64xf32> to vector<16x16xf32>
    %24 = vector.extract_strided_slice %16 {offsets = [0, 48], sizes = [16, 16], strides = [1, 1]} : vector<16x64xf32> to vector<16x16xf32>
    %cst_19 = arith.constant dense<0.000000e+00> : vector<16x16xf32>
    %25 = tpu.matmul %21, %22, %cst_19 {dimension_numbers = #tpu.dot_dimension_numbers<[1], [1], [0], [0], [0, 0, 1, 0], [], []>} : vector<16x16xf32>, vector<16x16xf32>, vector<16x16xf32> -> vector<16x16xf32>
    %cst_20 = arith.constant 1.000000e+00 : f32
    %26 = vector.broadcast %cst_20 : f32 to vector<16x16xf32>
    %27 = arith.subf %3, %26 : vector<16x16xf32>
    %cst_21 = arith.constant 1.000000e+30 : f32
    %28 = vector.broadcast %cst_21 : f32 to vector<16x16xf32>
    %29 = arith.mulf %27, %28 : vector<16x16xf32>
    %30 = arith.addf %25, %29 : vector<16x16xf32>
    %cst_22 = arith.constant dense<0xFF800000> : vector<16xf32>
    %31 = vector.multi_reduction <maximumf>, %30, %cst_22 [1] : vector<16x16xf32> to vector<16xf32>
    %32 = vector.shape_cast %31 : vector<16xf32> to vector<16x1xf32>
    %33 = vector.broadcast %32 : vector<16x1xf32> to vector<16x16xf32>
    %34 = arith.subf %30, %33 : vector<16x16xf32>
    %35 = math.exp %34 : vector<16x16xf32>
    %36 = arith.mulf %35, %3 : vector<16x16xf32>
    %cst_23 = arith.constant dense<0.000000e+00> : vector<16xf32>
    %37 = vector.multi_reduction <add>, %36, %cst_23 [1] : vector<16x16xf32> to vector<16xf32>
    %38 = vector.shape_cast %37 : vector<16xf32> to vector<16x1xf32>
    %cst_24 = arith.constant 0.000000e+00 : f32
    %39 = vector.broadcast %cst_24 : f32 to vector<16x1xf32>
    %40 = arith.cmpf ogt, %38, %39 : vector<16x1xf32>
    %cst_25 = arith.constant 1.000000e+00 : f32
    %41 = vector.broadcast %cst_25 : f32 to vector<16x1xf32>
    %42 = arith.select %40, %38, %41 : vector<16x1xi1>, vector<16x1xf32>
    %43 = tpu.reciprocal %42 {approx = true} : vector<16x1xf32> -> vector<16x1xf32>
    %cst_26 = arith.constant dense<0.000000e+00> : vector<16x16xf32>
    %44 = tpu.matmul %36, %23, %cst_26 {dimension_numbers = #tpu.dot_dimension_numbers<[1], [0], [0], [1], [0, 0, 1, 1], [], []>} : vector<16x16xf32>, vector<16x16xf32>, vector<16x16xf32> -> vector<16x16xf32>
    %45 = vector.broadcast %43 : vector<16x1xf32> to vector<16x16xf32>
    %46 = arith.mulf %44, %45 : vector<16x16xf32>
    %47 = arith.addf %46, %24 : vector<16x16xf32>
    %cst_27 = arith.constant 0.000000e+00 : f32
    %48 = vector.broadcast %cst_27 : f32 to vector<16x16xf32>
    %49 = arith.maximumf %47, %48 : vector<16x16xf32>
    %cst_28 = arith.constant dense<0.000000e+00> : vector<16x128xf32>
    %50 = tpu.matmul %49, %7, %cst_28 {dimension_numbers = #tpu.dot_dimension_numbers<[1], [0], [0], [1], [0, 0, 1, 1], [], []>} : vector<16x16xf32>, vector<16x128xf32>, vector<16x128xf32> -> vector<16x128xf32>
    %51 = vector.broadcast %11 : vector<1x128xf32> to vector<16x128xf32>
    %52 = arith.addf %50, %51 : vector<16x128xf32>
    %53 = vector.extract_strided_slice %52 {offsets = [0, 0], sizes = [16, 32], strides = [1, 1]} : vector<16x128xf32> to vector<16x32xf32>
    %cst_29 = arith.constant 3.200000e+01 : f32
    %54 = math.sqrt %cst_29 : f32
    %cst_30 = arith.constant 1.000000e+00 : f32
    %55 = arith.divf %cst_30, %54 : f32
    %56 = vector.broadcast %55 : f32 to vector<16x32xf32>
    %57 = arith.mulf %53, %56 : vector<16x32xf32>
    %58 = vector.extract_strided_slice %52 {offsets = [0, 32], sizes = [16, 32], strides = [1, 1]} : vector<16x128xf32> to vector<16x32xf32>
    %59 = vector.extract_strided_slice %52 {offsets = [0, 64], sizes = [16, 32], strides = [1, 1]} : vector<16x128xf32> to vector<16x32xf32>
    %60 = vector.extract_strided_slice %52 {offsets = [0, 96], sizes = [16, 32], strides = [1, 1]} : vector<16x128xf32> to vector<16x32xf32>
    %cst_31 = arith.constant dense<0.000000e+00> : vector<16x16xf32>
    %61 = tpu.matmul %57, %58, %cst_31 {dimension_numbers = #tpu.dot_dimension_numbers<[1], [1], [0], [0], [0, 0, 1, 0], [], []>} : vector<16x32xf32>, vector<16x32xf32>, vector<16x16xf32> -> vector<16x16xf32>
    %cst_32 = arith.constant 1.000000e+00 : f32
    %62 = vector.broadcast %cst_32 : f32 to vector<16x16xf32>
    %63 = arith.subf %3, %62 : vector<16x16xf32>
    %cst_33 = arith.constant 1.000000e+30 : f32
    %64 = vector.broadcast %cst_33 : f32 to vector<16x16xf32>
    %65 = arith.mulf %63, %64 : vector<16x16xf32>
    %66 = arith.addf %61, %65 : vector<16x16xf32>
    %cst_34 = arith.constant dense<0xFF800000> : vector<16xf32>
    %67 = vector.multi_reduction <maximumf>, %66, %cst_34 [1] : vector<16x16xf32> to vector<16xf32>
    %68 = vector.shape_cast %67 : vector<16xf32> to vector<16x1xf32>
    %69 = vector.broadcast %68 : vector<16x1xf32> to vector<16x16xf32>
    %70 = arith.subf %66, %69 : vector<16x16xf32>
    %71 = math.exp %70 : vector<16x16xf32>
    %72 = arith.mulf %71, %3 : vector<16x16xf32>
    %cst_35 = arith.constant dense<0.000000e+00> : vector<16xf32>
    %73 = vector.multi_reduction <add>, %72, %cst_35 [1] : vector<16x16xf32> to vector<16xf32>
    %74 = vector.shape_cast %73 : vector<16xf32> to vector<16x1xf32>
    %cst_36 = arith.constant 0.000000e+00 : f32
    %75 = vector.broadcast %cst_36 : f32 to vector<16x1xf32>
    %76 = arith.cmpf ogt, %74, %75 : vector<16x1xf32>
    %cst_37 = arith.constant 1.000000e+00 : f32
    %77 = vector.broadcast %cst_37 : f32 to vector<16x1xf32>
    %78 = arith.select %76, %74, %77 : vector<16x1xi1>, vector<16x1xf32>
    %79 = tpu.reciprocal %78 {approx = true} : vector<16x1xf32> -> vector<16x1xf32>
    %cst_38 = arith.constant dense<0.000000e+00> : vector<16x32xf32>
    %80 = tpu.matmul %72, %59, %cst_38 {dimension_numbers = #tpu.dot_dimension_numbers<[1], [0], [0], [1], [0, 0, 1, 1], [], []>} : vector<16x16xf32>, vector<16x32xf32>, vector<16x32xf32> -> vector<16x32xf32>
    %81 = vector.broadcast %79 : vector<16x1xf32> to vector<16x32xf32>
    %82 = arith.mulf %80, %81 : vector<16x32xf32>
    %83 = arith.addf %82, %60 : vector<16x32xf32>
    %cst_39 = arith.constant 0.000000e+00 : f32
    %84 = vector.broadcast %cst_39 : f32 to vector<16x32xf32>
    %85 = arith.maximumf %83, %84 : vector<16x32xf32>
    %cst_40 = arith.constant dense<0.000000e+00> : vector<8x32xf32>
    %86 = tpu.matmul %5, %85, %cst_40 {dimension_numbers = #tpu.dot_dimension_numbers<[1], [0], [0], [1], [0, 0, 1, 1], [], []>} : vector<8x16xf32>, vector<16x32xf32>, vector<8x32xf32> -> vector<8x32xf32>
    %cst_41 = arith.constant dense<0.000000e+00> : vector<8x64xf32>
    %87 = tpu.matmul %86, %8, %cst_41 {dimension_numbers = #tpu.dot_dimension_numbers<[1], [0], [0], [1], [0, 0, 1, 1], [], []>} : vector<8x32xf32>, vector<32x64xf32>, vector<8x64xf32> -> vector<8x64xf32>
    %88 = vector.broadcast %12 : vector<1x64xf32> to vector<8x64xf32>
    %89 = arith.addf %87, %88 : vector<8x64xf32>
    %cst_42 = arith.constant 0.000000e+00 : f32
    %90 = vector.broadcast %cst_42 : f32 to vector<8x64xf32>
    %91 = arith.maximumf %89, %90 : vector<8x64xf32>
    %cst_43 = arith.constant dense<0.000000e+00> : vector<8x128xf32>
    %92 = tpu.matmul %91, %9, %cst_43 {dimension_numbers = #tpu.dot_dimension_numbers<[1], [0], [0], [1], [0, 0, 1, 1], [], []>} : vector<8x64xf32>, vector<64x128xf32>, vector<8x128xf32> -> vector<8x128xf32>
    %93 = vector.broadcast %13 : vector<1x128xf32> to vector<8x128xf32>
    %94 = arith.addf %92, %93 : vector<8x128xf32>
    %95 = arith.negf %94 : vector<8x128xf32>
    %96 = math.exp %95 : vector<8x128xf32>
    %cst_44 = arith.constant 1.000000e+00 : f32
    %97 = vector.broadcast %cst_44 : f32 to vector<8x128xf32>
    %98 = arith.addf %97, %96 : vector<8x128xf32>
    %99 = arith.divf %97, %98 : vector<8x128xf32>
    %c0_45 = arith.constant 0 : index
    %c0_46 = arith.constant 0 : index
    %c0_47 = arith.constant 0 : index
    %100 = vector.load %arg3[%c0_45, %c0_46, %c0_47] : memref<1x8x128xf32, #tpu.memory_space<vmem>>, vector<1x8x128xf32>
    %101 = vector.shape_cast %100 : vector<1x8x128xf32> to vector<8x128xf32>
    %102 = vector.shape_cast %99 : vector<8x128xf32> to vector<1x8x128xf32>
    tpu.vector_store %arg3[%c0_45, %c0_46, %c0_47], %102 {strides = array<i32>} : memref<1x8x128xf32, #tpu.memory_space<vmem>>, vector<1x8x128xf32>,
    return
  }
  func.func @transform_0(%arg0: i32) -> (i32, i32, i32) {
    %c0_i32 = arith.constant 0 : i32
    %c0_i32_0 = arith.constant 0 : i32
    %c0_i32_1 = arith.constant 0 : i32
    return %arg0, %c0_i32, %c0_i32_0 : i32, i32, i32
  }
  func.func @transform_1(%arg0: i32) -> (i32, i32) {
    %c0_i32 = arith.constant 0 : i32
    %c0_i32_0 = arith.constant 0 : i32
    %c0_i32_1 = arith.constant 0 : i32
    return %c0_i32, %c0_i32_0 : i32, i32
  }
  func.func @transform_2(%arg0: i32) -> (i32, i32, i32) {
    %c0_i32 = arith.constant 0 : i32
    %c0_i32_0 = arith.constant 0 : i32
    %c0_i32_1 = arith.constant 0 : i32
    return %arg0, %c0_i32, %c0_i32_0 : i32, i32, i32
  }
}

</mosaic_0001>

<llo_original>
// kernel: tpu_custom_call.1
$region0: #{tpu_custom_call.1}
  #allocation0 [shape = 'u32[]', space=smem, size = 0x4, offset = 0x4, fixed_abs, tag = 'smem constant byte address 0x4 - core index']
  #allocation1 [shape = 'u32[144,128]{1,0:T(1,128)}', space=vmem, size = 0x12000, scoped, tag = 'internal scratch']
  %s0 = inlined_call_operand.hbm [shape: f32[4,40,128], index: 0, kind: input, shape index: {}]
  %s1 = inlined_call_operand.hbm [shape: f32[160,128], index: 1, kind: input, shape index: {}]
  %s2 = inlined_call_operand.hbm [shape: f32[4,8,128], index: 2, kind: output, shape index: {}]
  %s3 = sld [smem:[#allocation0]]
  $region49: #{tpu_custom_call.1} parent=0
    _
  %s5 = ssub.s32 1, %s3
  %s6 = scalar_select 0, %s5, %s3
  $region1: #{tpu_custom_call.1} parent=0
    #allocation2 [shape = 'u8[40960]{0}', space=vmem, size = 0xa000, scoped, tag = 'input window, operand 0']
    #allocation3 [shape = 's32[2]{0}', space=sflag, size = 0x8, scoped, tag = 'scoped memory for tpu_custom_call.1']
    #allocation4 [shape = 's32[2]{0}', space=sflag, size = 0x8, scoped, tag = 'scoped memory for tpu_custom_call.1']
    #allocation5 [shape = 'u8[81920]{0}', space=vmem, size = 0x14000, scoped, tag = 'input window, operand 1, single buffered']
    #allocation6 [shape = 's32[1]{0}', space=sflag, size = 0x4, scoped, tag = 'scoped memory for tpu_custom_call.1']
    #allocation7 [shape = 'u8[8192]{0}', space=vmem, size = 0x2000, scoped, tag = 'output window, operand 0']
    %7 = vsyncpa [#allocation3], 0
    %s8 = scalar_lea.sflag [#allocation3], 1
    %9 = vsyncpa %s8, 0
    %10 = vsyncpa [#allocation6], 0
    %11 = vsyncpa [#allocation4], 0
    %s12 = scalar_lea.sflag [#allocation4], 1
    %13 = vsyncpa %s12, 0
    loop: start=0, step=1, limit=6
    $region2: #{tpu_custom_call.1} parent=1 // loop_pre_header
      _
    $region3: #{tpu_custom_call.1} parent=1 // loop_header
      %s15 = sphi 0, %s19
      %p16 = scmp.ge.s32.totalorder %s15, 6
      %s25 = sphi 0, %s27
      %s28 = sphi 0, %s25
      %s29 = sphi 0, %s28
      %s45 = sphi 0, %s29
      %s49 = sphi 0, %s49
      %s51 = sphi 0, %s49
      %s52 = sphi 0, %s51
      %s66 = sphi 0, %s52
      %s72 = sphi 0, %s74
      %s75 = sphi 0, %s72
      %s76 = sphi 0, %s75
      %s92 = sphi 0, %s76
    $region4: #{tpu_custom_call.1} parent=1 // loop_header_branch
      %18 = sbr.rel (%p16) target = $region8
    $region5: #{tpu_custom_call.1} parent=1 // loop_body
      %s20 = ssub.s32 %s15, 1
      %s21 = ssub.s32 %s15, 2
      %s22 = sadd.s32 %s15, 1
      %s23 = ssub.s32 %s15, %s22
      %p24 = scmp.eq.s32.totalorder %s23, 0
      %s26 = sadd.s32 %s25, 1
      %s27 = scalar_select %p24, %s25, %s26
      %p30 = pneg %p24
      %p31 = scmp.eq.s32.totalorder %s15, 3
      %p32 = por %p30, %p31
      %p33 = scmp.ne.s32.totalorder %s25, %s28
      %p34 = scmp.eq.s32.totalorder %s15, 0
      %p35 = por %p33, %p34
      %p36 = scmp.ne.s32.totalorder %s25, %s28
      %p37 = scmp.eq.s32.totalorder %s20, 3
      %p38 = por %p36, %p37
      %p39 = scmp.ne.s32.totalorder %s28, %s29
      %p40 = scmp.eq.s32.totalorder %s20, 0
      %p41 = por %p39, %p40
      %p42 = scmp.ne.s32.totalorder %s28, %s29
      %p43 = scmp.eq.s32.totalorder %s21, 3
      %p44 = por %p42, %p43
      %p46 = scmp.ne.s32.totalorder %s29, %s45
      %p47 = scmp.eq.s32.totalorder %s21, 0
      %p48 = por %p46, %p47
      %s50 = sadd.s32 %s49, 1
      %p53 = scmp.eq.s32.totalorder %s15, 3
      %p54 = scmp.ne.s32.totalorder %s49, %s51
      %p55 = scmp.eq.s32.totalorder %s15, 0
      %p56 = por %p54, %p55
      %p57 = scmp.ne.s32.totalorder %s49, %s51
      %p58 = scmp.eq.s32.totalorder %s20, 3
      %p59 = por %p57, %p58
      %p60 = scmp.ne.s32.totalorder %s51, %s52
      %p61 = scmp.eq.s32.totalorder %s20, 0
      %p62 = por %p60, %p61
      %p63 = scmp.ne.s32.totalorder %s51, %s52
      %p64 = scmp.eq.s32.totalorder %s21, 3
      %p65 = por %p63, %p64
      %p67 = scmp.ne.s32.totalorder %s52, %s66
      %p68 = scmp.eq.s32.totalorder %s21, 0
      %p69 = por %p67, %p68
      %s70 = ssub.s32 %s15, %s22
      %p71 = scmp.eq.s32.totalorder %s70, 0
      %s73 = sadd.s32 %s72, 1
      %s74 = scalar_select %p71, %s72, %s73
      %p77 = pneg %p71
      %p78 = scmp.eq.s32.totalorder %s15, 3
      %p79 = por %p77, %p78
      %p80 = scmp.ne.s32.totalorder %s72, %s75
      %p81 = scmp.eq.s32.totalorder %s15, 0
      %p82 = por %p80, %p81
      %p83 = scmp.ne.s32.totalorder %s72, %s75
      %p84 = scmp.eq.s32.totalorder %s20, 3
      %p85 = por %p83, %p84
      %p86 = scmp.ne.s32.totalorder %s75, %s76
      %p87 = scmp.eq.s32.totalorder %s20, 0
      %p88 = por %p86, %p87
      %p89 = scmp.ne.s32.totalorder %s75, %s76
      %p90 = scmp.eq.s32.totalorder %s21, 3
      %p91 = por %p89, %p90
      %p93 = scmp.ne.s32.totalorder %s76, %s92
      %p94 = scmp.eq.s32.totalorder %s21, 0
      %p95 = por %p93, %p94
      %p96 = scmp.le.s32.totalorder 1, %s15
      %p97 = scmp.lt.s32.totalorder %s15, 5
      %p98 = pnand %p96, %p97
      %p99 = pneg %p98
      // Predicated region
      $region9: #{tpu_custom_call.1} parent=5 // pred_check
        _
      $region10: #{tpu_custom_call.1} parent=5 // pred_check_branch
        %101 = sbr.rel (%p98) target = $region12
      $region11: #{tpu_custom_call.1} parent=5 // pred_region
        %s102 = ssub.s32 %s15, 1
        // Predicated region
        $region13: #{tpu_custom_call.1} parent=11 // pred_check
          %p103 = pneg %p62
        $region14: #{tpu_custom_call.1} parent=11 // pred_check_branch
          %105 = sbr.rel (%p103) target = $region16
        $region15: #{tpu_custom_call.1} parent=11 // pred_region
          %s107 = ssub.s32 2560, 2560
          %108 = vsyncadd [#allocation6], %s107
          %s109 = sshll.u32 [#allocation5], 4
          %s110 = int_to_ptr.vmem [resolvable:$true] %s109
          %115 = dma.hbm_to_vmem [thread:$0]  %s1, 2560, %s110, [#allocation6], 128, 128, 8
        $region16: #{tpu_custom_call.1} parent=11 // pred_fallthru
          _
      $region12: #{tpu_custom_call.1} parent=5 // pred_fallthru
        _
      %p116 = scmp.lt.s32.totalorder %s15, 4
      // Predicated region
      $region17: #{tpu_custom_call.1} parent=5 // pred_check
        %p117 = pneg %p116
      $region18: #{tpu_custom_call.1} parent=5 // pred_check_branch
        %119 = sbr.rel (%p117) target = $region20
      $region19: #{tpu_custom_call.1} parent=5 // pred_region
        // Predicated region
        $region21: #{tpu_custom_call.1} parent=19 // pred_check
          %p120 = pneg %p35
        $region22: #{tpu_custom_call.1} parent=19 // pred_check_branch
          %122 = sbr.rel (%p120) target = $region24
        $region23: #{tpu_custom_call.1} parent=19 // pred_region
          %s123 = sand.u32 %s25, 1
          %s124 = scalar_lea.sflag [#allocation3], %s123
          %s125 = sand.u32 %s25, 1
          %s126 = smul.addr %s125, 40
          %s127 = scalar_lea.vmem [#allocation2], %s126
          %s129 = ssub.s32 640, 640
          %130 = vsyncadd %s124, %s129
          %s131 = smul.addr %s15, 5
          %s132 = smul.addr %s131, 128
          %s133 = scalar_lea.hbm %s0, %s132
          %s134 = sshll.u32 %s127, 4
          %s135 = int_to_ptr.vmem [resolvable:$true] %s134
          %140 = dma.hbm_to_vmem [thread:$0]  %s133, 640, %s135, %s124, 128, 128, 8
        $region24: #{tpu_custom_call.1} parent=19 // pred_fallthru
          _
      $region20: #{tpu_custom_call.1} parent=5 // pred_fallthru
        _
      %p141 = scmp.le.s32.totalorder 1, %s15
      %p142 = scmp.lt.s32.totalorder %s15, 5
      %p143 = pnand %p141, %p142
      %p144 = pneg %p143
      // Predicated region
      $region25: #{tpu_custom_call.1} parent=5 // pred_check
        _
      $region26: #{tpu_custom_call.1} parent=5 // pred_check_branch
        %146 = sbr.rel (%p143) target = $region28
      $region27: #{tpu_custom_call.1} parent=5 // pred_region
        %s147 = ssub.s32 %s15, 1
        %s148 = sand.u32 %s28, 1
        %s149 = scalar_lea.sflag [#allocation3], %s148
        %s150 = sand.u32 %s28, 1
        %s151 = smul.addr %s150, 40
        %s152 = scalar_lea.vmem [#allocation2], %s151
        // Predicated region
        $region29: #{tpu_custom_call.1} parent=27 // pred_check
          %p153 = pneg %p41
        $region30: #{tpu_custom_call.1} parent=27 // pred_check_branch
          %155 = sbr.rel (%p153) target = $region32
        $region31: #{tpu_custom_call.1} parent=27 // pred_region
          %156 = dma.done %s149, 640
        $region32: #{tpu_custom_call.1} parent=27 // pred_fallthru
          _
        // Predicated region
        $region33: #{tpu_custom_call.1} parent=27 // pred_check
          %p157 = pneg %p62
        $region34: #{tpu_custom_call.1} parent=27 // pred_check_branch
          %159 = sbr.rel (%p157) target = $region36
        $region35: #{tpu_custom_call.1} parent=27 // pred_region
          %160 = dma.done [#allocation6], 2560
        $region36: #{tpu_custom_call.1} parent=27 // pred_fallthru
          _
        %s161 = sand.u32 %s28, 1
        %s162 = scalar_lea.sflag [#allocation3], %s161
        %s163 = sand.u32 %s28, 1
        %s164 = smul.addr %s163, 40
        %s165 = scalar_lea.vmem [#allocation2], %s164
        %p166 = pneg %p41
        %p167 = pneg %p38
        %p168 = pneg %p62
        %p169 = pneg %p59
        %p170 = pneg %p88
        %p171 = pneg %p85
        %s172 = sand.u32 %s75, 1
        %s173 = scalar_lea.sflag [#allocation4], %s172
        %s174 = sand.u32 %s75, 1
        %s175 = smul.addr %s174, 8
        %s176 = scalar_lea.vmem [#allocation7], %s175
        %v177 = vld [vmem:[%s152] sm:$0xff]
        %v178 = vld [vmem:[%s152 + $0x8] sm:$0xff]
        %v179 = vld [vmem:[%s152 + $0x10] sm:$0xff]
        %v180 = vld [vmem:[%s152 + $0x18] sm:$0xff]
        %v181 = vld [vmem:[%s152 + $0x20] sm:$0xff]
        %v182 = vld [vmem:[#allocation5] sm:$0xff]
        %v183 = vld [vmem:[#allocation5 + $0x8] sm:$0xff]
        %v184 = vld [vmem:[#allocation5 + $0x10] sm:$0xff]
        %v185 = vld [vmem:[#allocation5 + $0x18] sm:$0xff]
        %v186 = vld [vmem:[#allocation5 + $0x20] sm:$0xff]
        %v187 = vld [vmem:[#allocation5 + $0x28] sm:$0xff]
        %v188 = vld [vmem:[#allocation5 + $0x30] sm:$0xff]
        %v189 = vld [vmem:[#allocation5 + $0x38] sm:$0xff]
        %v190 = vld [vmem:[#allocation5 + $0x40] sm:$0xff]
        %v191 = vld [vmem:[#allocation5 + $0x48] sm:$0xff]
        %v192 = vld [vmem:[#allocation5 + $0x50] sm:$0xff]
        %v193 = vld [vmem:[#allocation5 + $0x58] sm:$0xff]
        %v194 = vld [vmem:[#allocation5 + $0x60] sm:$0xff]
        %v195 = vld [vmem:[#allocation5 + $0x68] sm:$0xff]
        %v196 = vld [vmem:[#allocation5 + $0x70] sm:$0xff]
        %v197 = vld [vmem:[#allocation5 + $0x78] sm:$0xff]
        %v198 = vld [vmem:[#allocation5 + $0x80] sm:$0x1]
        %v199 = vld [vmem:[#allocation5 + $0x88] sm:$0x1]
        %v200 = vld [vmem:[#allocation5 + $0x90] sm:$0x1]
        %v201 = vld [vmem:[#allocation5 + $0x98] sm:$0x1]
        %v202 = vlaneseq
        %v203 = vshrl.u32 %v202, 7
        %v204 = vsub.s32 0, %v203
        %v205 = vrot.slane %v198, %v204
        %vm206 = vcmask 130048
        %v208 = vsel %vm206, %v177, 0
        %v211 = vsel %vm206, %v178, 0
        %213 = vmatprep.subr.mxu0 0.0
        %214 = vmatpush1.msra.mxu0 0.0
        %215 = vmatprep.subr.mxu0 0.0
        %216 = vmatpush1.msra.mxu0 0.0
        %217 = vmatprep.subr.mxu0 0.0
        %218 = vmatpush1.msra.mxu0 0.0
        %219 = vmatprep.subr.mxu0 0.0
        %220 = vmatpush1.msra.mxu0 0.0
        %221 = vmatprep.subr.mxu0 0.0
        %222 = vmatpush1.msra.mxu0 0.0
        %223 = vmatprep.subr.mxu0 0.0
        %224 = vmatpush1.msra.mxu0 0.0
        %225 = vmatprep.subr.mxu0 0.0
        %226 = vmatpush1.msra.mxu0 0.0
        %227 = vmatprep.subr.mxu0 0.0
        %228 = vmatpush1.msra.mxu0 0.0
        %229 = vmatprep.subr.mxu0 0.0
        %230 = vmatpush1.msra.mxu0 0.0
        %231 = vmatprep.subr.mxu0 0.0
        %232 = vmatpush1.msra.mxu0 0.0
        %233 = vmatprep.subr.mxu0 0.0
        %234 = vmatpush1.msra.mxu0 0.0
        %235 = vmatprep.subr.mxu0 0.0
        %236 = vmatpush1.msra.mxu0 0.0
        %237 = vmatprep.subr.mxu0 0.0
        %238 = vmatpush1.msra.mxu0 0.0
        %239 = vmatprep.subr.mxu0 0.0
        %240 = vmatpush1.msra.mxu0 0.0
        %241 = vmatprep.subr.mxu0 0.0
        %242 = vmatpush1.msra.mxu0 %v183
        %243 = vmatprep.subr.mxu0 0.0
        %244 = vmatpush1.msra.mxu0 %v182
        %245 = vmatprep.subr.mxu0 0.0
        %246 = vmatpush2.msra.mxu0 0.0
        %247 = vmatprep.subr.mxu0 0.0
        %248 = vmatpush2.msra.mxu0 0.0
        %249 = vmatprep.subr.mxu0 0.0
        %250 = vmatpush2.msra.mxu0 0.0
        %251 = vmatprep.subr.mxu0 0.0
        %252 = vmatpush2.msra.mxu0 0.0
        %253 = vmatprep.subr.mxu0 0.0
        %254 = vmatpush2.msra.mxu0 0.0
        %255 = vmatprep.subr.mxu0 0.0
        %256 = vmatpush2.msra.mxu0 0.0
        %257 = vmatprep.subr.mxu0 0.0
        %258 = vmatpush2.msra.mxu0 0.0
        %259 = vmatprep.subr.mxu0 0.0
        %260 = vmatpush2.msra.mxu0 0.0
        %261 = vmatprep.subr.mxu0 0.0
        %262 = vmatpush2.msra.mxu0 0.0
        %263 = vmatprep.subr.mxu0 0.0
        %264 = vmatpush2.msra.mxu0 0.0
        %265 = vmatprep.subr.mxu0 0.0
        %266 = vmatpush2.msra.mxu0 0.0
        %267 = vmatprep.subr.mxu0 0.0
        %268 = vmatpush2.msra.mxu0 0.0
        %269 = vmatprep.subr.mxu0 0.0
        %270 = vmatpush2.msra.mxu0 0.0
        %271 = vmatprep.subr.mxu0 0.0
        %272 = vmatpush2.msra.mxu0 0.0
        %273 = vmatprep.subr.mxu0 0.0
        %274 = vmatpush2.msra.mxu0 0.0
        %275 = vmatprep.subr.mxu0 0.0
        %276 = vmatpush2.msra.mxu0 0.0
        %277 = vmatprep.mubr.f32.mxu0 0.0
        %278 = vmatmul.mubr.f32.gmra.mxu0 %v208
        %v279 = vpop.f32.mrf.mxu0
        %v280 = vadd.f32 %v205, %v279
        %v281 = vpop.f32.mrf.mxu0
        %282 = vmatprep.mubr.f32.mxu0 0.0
        %283 = vmatmul.mubr.f32.gmra.mxu0 %v211
        %v284 = vpop.f32.mrf.mxu0
        %v285 = vadd.f32 %v205, %v284
        %v286 = vpop.f32.mrf.mxu0
        %287 = vdwg.mxu0
        %v288 = vmul.f32 %v280, 0.25
        %v289 = vmul.f32 %v285, 0.25
        %v290 = vsub.f32 %v179, 1.0
        %v291 = vsub.f32 %v180, 1.0
        %v292 = vmul.f32 %v290, 1e+30
        %v293 = vmul.f32 %v291, 1e+30
        %296 = vrot.lane.b32.xlu0 %v280, 112
        %v297 = vpop.permute.xlu0 %296
        %298 = vrot.lane.b32.xlu0 %v285, 112
        %v299 = vpop.permute.xlu0 %298
        %v301 = vsel %vm206, %v288, 0
        %v304 = vsel %vm206, %v289, 0
        %v306 = vsel %vm206, %v297, 0
        %v308 = vsel %vm206, %v299, 0
        %310 = vmatprep.subr.mxu0 0.0
        %311 = vmatpush1.xpose.msra.mxu0 0.0
        %312 = vmatprep.subr.mxu0 0.0
        %313 = vmatpush1.xpose.msra.mxu0 0.0
        %314 = vmatprep.subr.mxu0 0.0
        %315 = vmatpush1.xpose.msra.mxu0 0.0
        %316 = vmatprep.subr.mxu0 0.0
        %317 = vmatpush1.xpose.msra.mxu0 0.0
        %318 = vmatprep.subr.mxu0 0.0
        %319 = vmatpush1.xpose.msra.mxu0 0.0
        %320 = vmatprep.subr.mxu0 0.0
        %321 = vmatpush1.xpose.msra.mxu0 0.0
        %322 = vmatprep.subr.mxu0 0.0
        %323 = vmatpush1.xpose.msra.mxu0 0.0
        %324 = vmatprep.subr.mxu0 0.0
        %325 = vmatpush1.xpose.msra.mxu0 0.0
        %326 = vmatprep.subr.mxu0 0.0
        %327 = vmatpush1.xpose.msra.mxu0 0.0
        %328 = vmatprep.subr.mxu0 0.0
        %329 = vmatpush1.xpose.msra.mxu0 0.0
        %330 = vmatprep.subr.mxu0 0.0
        %331 = vmatpush1.xpose.msra.mxu0 0.0
        %332 = vmatprep.subr.mxu0 0.0
        %333 = vmatpush1.xpose.msra.mxu0 0.0
        %334 = vmatprep.subr.mxu0 0.0
        %335 = vmatpush1.xpose.msra.mxu0 0.0
        %336 = vmatprep.subr.mxu0 0.0
        %337 = vmatpush1.xpose.msra.mxu0 0.0
        %338 = vmatprep.subr.mxu0 0.0
        %339 = vmatpush1.xpose.msra.mxu0 %v308
        %340 = vmatprep.subr.mxu0 0.0
        %341 = vmatpush1.xpose.msra.mxu0 %v306
        %342 = vmatprep.subr.mxu0 0.0
        %343 = vmatpush2.xpose.msra.mxu0 0.0
        %344 = vmatprep.subr.mxu0 0.0
        %345 = vmatpush2.xpose.msra.mxu0 0.0
        %346 = vmatprep.subr.mxu0 0.0
        %347 = vmatpush2.xpose.msra.mxu0 0.0
        %348 = vmatprep.subr.mxu0 0.0
        %349 = vmatpush2.xpose.msra.mxu0 0.0
        %350 = vmatprep.subr.mxu0 0.0
        %351 = vmatpush2.xpose.msra.mxu0 0.0
        %352 = vmatprep.subr.mxu0 0.0
        %353 = vmatpush2.xpose.msra.mxu0 0.0
        %354 = vmatprep.subr.mxu0 0.0
        %355 = vmatpush2.xpose.msra.mxu0 0.0
        %356 = vmatprep.subr.mxu0 0.0
        %357 = vmatpush2.xpose.msra.mxu0 0.0
        %358 = vmatprep.subr.mxu0 0.0
        %359 = vmatpush2.xpose.msra.mxu0 0.0
        %360 = vmatprep.subr.mxu0 0.0
        %361 = vmatpush2.xpose.msra.mxu0 0.0
        %362 = vmatprep.subr.mxu0 0.0
        %363 = vmatpush2.xpose.msra.mxu0 0.0
        %364 = vmatprep.subr.mxu0 0.0
        %365 = vmatpush2.xpose.msra.mxu0 0.0
        %366 = vmatprep.subr.mxu0 0.0
        %367 = vmatpush2.xpose.msra.mxu0 0.0
        %368 = vmatprep.subr.mxu0 0.0
        %369 = vmatpush2.xpose.msra.mxu0 0.0
        %370 = vmatprep.subr.mxu0 0.0
        %371 = vmatpush2.xpose.msra.mxu0 0.0
        %372 = vmatprep.subr.mxu0 0.0
        %373 = vmatpush2.xpose.msra.mxu0 0.0
        %374 = vmatprep.mubr.f32.mxu0 0.0
        %375 = vmatmul.mubr.f32.gmra.mxu0 %v301
        %v376 = vpop.f32.mrf.mxu0
        %v377 = vadd.f32 %v292, %v376
        %v378 = vpop.f32.mrf.mxu0
        %379 = vmatprep.mubr.f32.mxu0 0.0
        %380 = vmatmul.mubr.f32.gmra.mxu0 %v304
        %v381 = vpop.f32.mrf.mxu0
        %v382 = vadd.f32 %v293, %v381
        %v383 = vpop.f32.mrf.mxu0
        %384 = vdwg.mxu0
        %v385 = vsel %vm206, %v377, -inf
        %386 = vmax.xlane.f32.xlu0 %v385
        %v387 = vpop.xlane.xlu0 %386
        %v388 = vsel %vm206, %v382, -inf
        %389 = vmax.xlane.f32.xlu0 %v388
        %v390 = vpop.xlane.xlu0 %389
        %v391 = vsub.f32 %v377, %v387
        %v392 = vsub.f32 %v382, %v390
        %v393 = vmul.f32 %v391, 1.442695
        %v394 = vpow.pop %v393
        %v395 = vmul.f32 %v392, 1.442695
        %v396 = vpow.pop %v395
        %v397 = vmul.f32 %v394, %v179
        %v398 = vmul.f32 %v396, %v180
        %v399 = vsel %vm206, %v397, 0.0
        %400 = vadd.xlane.f32.xlu0 %v399
        %v401 = vpop.xlane.xlu0 %400
        %v402 = vsel %vm206, %v398, 0.0
        %403 = vadd.xlane.f32.xlu0 %v402
        %v404 = vpop.xlane.xlu0 %403
        %vm405 = vcmp.gt.f32.partialorder %v401, 0.0
        %vm406 = vcmp.gt.f32.partialorder %v404, 0.0
        %v407 = vsel %vm405, %v401, 1.0
        %v408 = vsel %vm406, %v404, 1.0
        %v409 = vrcp.pop %v407
        %v410 = vrcp.pop %v408
        %411 = vrot.lane.b32.xlu0 %v280, 96
        %v412 = vpop.permute.xlu0 %411
        %413 = vrot.lane.b32.xlu0 %v285, 96
        %v414 = vpop.permute.xlu0 %413
        %v418 = vsel %vm206, %v397, 0
        %v421 = vsel %vm206, %v398, 0
        %423 = vmatprep.subr.mxu0 0.0
        %424 = vmatpush1.msra.mxu0 0.0
        %425 = vmatprep.subr.mxu0 0.0
        %426 = vmatpush1.msra.mxu0 0.0
        %427 = vmatprep.subr.mxu0 0.0
        %428 = vmatpush1.msra.mxu0 0.0
        %429 = vmatprep.subr.mxu0 0.0
        %430 = vmatpush1.msra.mxu0 0.0
        %431 = vmatprep.subr.mxu0 0.0
        %432 = vmatpush1.msra.mxu0 0.0
        %433 = vmatprep.subr.mxu0 0.0
        %434 = vmatpush1.msra.mxu0 0.0
        %435 = vmatprep.subr.mxu0 0.0
        %436 = vmatpush1.msra.mxu0 0.0
        %437 = vmatprep.subr.mxu0 0.0
        %438 = vmatpush1.msra.mxu0 0.0
        %439 = vmatprep.subr.mxu0 0.0
        %440 = vmatpush1.msra.mxu0 0.0
        %441 = vmatprep.subr.mxu0 0.0
        %442 = vmatpush1.msra.mxu0 0.0
        %443 = vmatprep.subr.mxu0 0.0
        %444 = vmatpush1.msra.mxu0 0.0
        %445 = vmatprep.subr.mxu0 0.0
        %446 = vmatpush1.msra.mxu0 0.0
        %447 = vmatprep.subr.mxu0 0.0
        %448 = vmatpush1.msra.mxu0 0.0
        %449 = vmatprep.subr.mxu0 0.0
        %450 = vmatpush1.msra.mxu0 0.0
        %451 = vmatprep.subr.mxu0 0.0
        %452 = vmatpush1.msra.mxu0 %v414
        %453 = vmatprep.subr.mxu0 0.0
        %454 = vmatpush1.msra.mxu0 %v412
        %455 = vmatprep.subr.mxu0 0.0
        %456 = vmatpush2.msra.mxu0 0.0
        %457 = vmatprep.subr.mxu0 0.0
        %458 = vmatpush2.msra.mxu0 0.0
        %459 = vmatprep.subr.mxu0 0.0
        %460 = vmatpush2.msra.mxu0 0.0
        %461 = vmatprep.subr.mxu0 0.0
        %462 = vmatpush2.msra.mxu0 0.0
        %463 = vmatprep.subr.mxu0 0.0
        %464 = vmatpush2.msra.mxu0 0.0
        %465 = vmatprep.subr.mxu0 0.0
        %466 = vmatpush2.msra.mxu0 0.0
        %467 = vmatprep.subr.mxu0 0.0
        %468 = vmatpush2.msra.mxu0 0.0
        %469 = vmatprep.subr.mxu0 0.0
        %470 = vmatpush2.msra.mxu0 0.0
        %471 = vmatprep.subr.mxu0 0.0
        %472 = vmatpush2.msra.mxu0 0.0
        %473 = vmatprep.subr.mxu0 0.0
        %474 = vmatpush2.msra.mxu0 0.0
        %475 = vmatprep.subr.mxu0 0.0
        %476 = vmatpush2.msra.mxu0 0.0
        %477 = vmatprep.subr.mxu0 0.0
        %478 = vmatpush2.msra.mxu0 0.0
        %479 = vmatprep.subr.mxu0 0.0
        %480 = vmatpush2.msra.mxu0 0.0
        %481 = vmatprep.subr.mxu0 0.0
        %482 = vmatpush2.msra.mxu0 0.0
        %483 = vmatprep.subr.mxu0 0.0
        %484 = vmatpush2.msra.mxu0 0.0
        %485 = vmatprep.subr.mxu0 0.0
        %486 = vmatpush2.msra.mxu0 0.0
        %487 = vmatprep.mubr.f32.mxu0 0.0
        %488 = vmatmul.mubr.f32.gmra.mxu0 %v418
        %v489 = vpop.f32.mrf.mxu0
        %v490 = vadd.f32 0.0, %v489
        %v491 = vpop.f32.mrf.mxu0
        %492 = vmatprep.mubr.f32.mxu0 0.0
        %493 = vmatmul.mubr.f32.gmra.mxu0 %v421
        %v494 = vpop.f32.mrf.mxu0
        %v495 = vadd.f32 0.0, %v494
        %v496 = vpop.f32.mrf.mxu0
        %497 = vdwg.mxu0
        %v498 = vmul.f32 %v490, %v409
        %v499 = vmul.f32 %v495, %v410
        %500 = vrot.lane.b32.xlu0 %v280, 80
        %v501 = vpop.permute.xlu0 %500
        %502 = vrot.lane.b32.xlu0 %v285, 80
        %v503 = vpop.permute.xlu0 %502
        %v506 = vadd.f32 %v498, %v501
        %v507 = vadd.f32 %v499, %v503
        %v508 = vmax.f32 %v506, 0.0
        %v509 = vmax.f32 %v507, 0.0
        %v510 = vlaneseq
        %v511 = vshrl.u32 %v510, 7
        %v512 = vsub.s32 0, %v511
        %v513 = vrot.slane %v199, %v512
        %v515 = vsel %vm206, %v508, 0
        %v518 = vsel %vm206, %v509, 0
        %520 = vmatprep.subr.mxu0 0.0
        %521 = vmatpush1.msra.mxu0 0.0
        %522 = vmatprep.subr.mxu0 0.0
        %523 = vmatpush1.msra.mxu0 0.0
        %524 = vmatprep.subr.mxu0 0.0
        %525 = vmatpush1.msra.mxu0 0.0
        %526 = vmatprep.subr.mxu0 0.0
        %527 = vmatpush1.msra.mxu0 0.0
        %528 = vmatprep.subr.mxu0 0.0
        %529 = vmatpush1.msra.mxu0 0.0
        %530 = vmatprep.subr.mxu0 0.0
        %531 = vmatpush1.msra.mxu0 0.0
        %532 = vmatprep.subr.mxu0 0.0
        %533 = vmatpush1.msra.mxu0 0.0
        %534 = vmatprep.subr.mxu0 0.0
        %535 = vmatpush1.msra.mxu0 0.0
        %536 = vmatprep.subr.mxu0 0.0
        %537 = vmatpush1.msra.mxu0 0.0
        %538 = vmatprep.subr.mxu0 0.0
        %539 = vmatpush1.msra.mxu0 0.0
        %540 = vmatprep.subr.mxu0 0.0
        %541 = vmatpush1.msra.mxu0 0.0
        %542 = vmatprep.subr.mxu0 0.0
        %543 = vmatpush1.msra.mxu0 0.0
        %544 = vmatprep.subr.mxu0 0.0
        %545 = vmatpush1.msra.mxu0 0.0
        %546 = vmatprep.subr.mxu0 0.0
        %547 = vmatpush1.msra.mxu0 0.0
        %548 = vmatprep.subr.mxu0 0.0
        %549 = vmatpush1.msra.mxu0 %v185
        %550 = vmatprep.subr.mxu0 0.0
        %551 = vmatpush1.msra.mxu0 %v184
        %552 = vmatprep.subr.mxu0 0.0
        %553 = vmatpush2.msra.mxu0 0.0
        %554 = vmatprep.subr.mxu0 0.0
        %555 = vmatpush2.msra.mxu0 0.0
        %556 = vmatprep.subr.mxu0 0.0
        %557 = vmatpush2.msra.mxu0 0.0
        %558 = vmatprep.subr.mxu0 0.0
        %559 = vmatpush2.msra.mxu0 0.0
        %560 = vmatprep.subr.mxu0 0.0
        %561 = vmatpush2.msra.mxu0 0.0
        %562 = vmatprep.subr.mxu0 0.0
        %563 = vmatpush2.msra.mxu0 0.0
        %564 = vmatprep.subr.mxu0 0.0
        %565 = vmatpush2.msra.mxu0 0.0
        %566 = vmatprep.subr.mxu0 0.0
        %567 = vmatpush2.msra.mxu0 0.0
        %568 = vmatprep.subr.mxu0 0.0
        %569 = vmatpush2.msra.mxu0 0.0
        %570 = vmatprep.subr.mxu0 0.0
        %571 = vmatpush2.msra.mxu0 0.0
        %572 = vmatprep.subr.mxu0 0.0
        %573 = vmatpush2.msra.mxu0 0.0
        %574 = vmatprep.subr.mxu0 0.0
        %575 = vmatpush2.msra.mxu0 0.0
        %576 = vmatprep.subr.mxu0 0.0
        %577 = vmatpush2.msra.mxu0 0.0
        %578 = vmatprep.subr.mxu0 0.0
        %579 = vmatpush2.msra.mxu0 0.0
        %580 = vmatprep.subr.mxu0 0.0
        %581 = vmatpush2.msra.mxu0 0.0
        %582 = vmatprep.subr.mxu0 0.0
        %583 = vmatpush2.msra.mxu0 0.0
        %584 = vmatprep.mubr.f32.mxu0 0.0
        %585 = vmatmul.mubr.f32.gmra.mxu0 %v515
        %v586 = vpop.f32.mrf.mxu0
        %v587 = vadd.f32 %v513, %v586
        %v588 = vpop.f32.mrf.mxu0
        %589 = vmatprep.mubr.f32.mxu0 0.0
        %590 = vmatmul.mubr.f32.gmra.mxu0 %v518
        %v591 = vpop.f32.mrf.mxu0
        %v592 = vadd.f32 %v513, %v591
        %v593 = vpop.f32.mrf.mxu0
        %594 = vdwg.mxu0
        %v595 = vmul.f32 %v587, 0.17677669
        %v596 = vmul.f32 %v592, 0.17677669
        %599 = vrot.lane.b32.xlu0 %v587, 96
        %v600 = vpop.permute.xlu0 %599
        %601 = vrot.lane.b32.xlu0 %v592, 96
        %v602 = vpop.permute.xlu0 %601
        %vm603 = vcmask 261120
        %v605 = vsel %vm603, %v595, 0
        %v608 = vsel %vm603, %v596, 0
        %v610 = vsel %vm603, %v600, 0
        %v612 = vsel %vm603, %v602, 0
        %614 = vmatprep.subr.mxu0 0.0
        %615 = vmatpush1.xpose.msra.mxu0 0.0
        %616 = vmatprep.subr.mxu0 0.0
        %617 = vmatpush1.xpose.msra.mxu0 0.0
        %618 = vmatprep.subr.mxu0 0.0
        %619 = vmatpush1.xpose.msra.mxu0 0.0
        %620 = vmatprep.subr.mxu0 0.0
        %621 = vmatpush1.xpose.msra.mxu0 0.0
        %622 = vmatprep.subr.mxu0 0.0
        %623 = vmatpush1.xpose.msra.mxu0 0.0
        %624 = vmatprep.subr.mxu0 0.0
        %625 = vmatpush1.xpose.msra.mxu0 0.0
        %626 = vmatprep.subr.mxu0 0.0
        %627 = vmatpush1.xpose.msra.mxu0 0.0
        %628 = vmatprep.subr.mxu0 0.0
        %629 = vmatpush1.xpose.msra.mxu0 0.0
        %630 = vmatprep.subr.mxu0 0.0
        %631 = vmatpush1.xpose.msra.mxu0 0.0
        %632 = vmatprep.subr.mxu0 0.0
        %633 = vmatpush1.xpose.msra.mxu0 0.0
        %634 = vmatprep.subr.mxu0 0.0
        %635 = vmatpush1.xpose.msra.mxu0 0.0
        %636 = vmatprep.subr.mxu0 0.0
        %637 = vmatpush1.xpose.msra.mxu0 0.0
        %638 = vmatprep.subr.mxu0 0.0
        %639 = vmatpush1.xpose.msra.mxu0 0.0
        %640 = vmatprep.subr.mxu0 0.0
        %641 = vmatpush1.xpose.msra.mxu0 0.0
        %642 = vmatprep.subr.mxu0 0.0
        %643 = vmatpush1.xpose.msra.mxu0 %v612
        %644 = vmatprep.subr.mxu0 0.0
        %645 = vmatpush1.xpose.msra.mxu0 %v610
        %646 = vmatprep.subr.mxu0 0.0
        %647 = vmatpush2.xpose.msra.mxu0 0.0
        %648 = vmatprep.subr.mxu0 0.0
        %649 = vmatpush2.xpose.msra.mxu0 0.0
        %650 = vmatprep.subr.mxu0 0.0
        %651 = vmatpush2.xpose.msra.mxu0 0.0
        %652 = vmatprep.subr.mxu0 0.0
        %653 = vmatpush2.xpose.msra.mxu0 0.0
        %654 = vmatprep.subr.mxu0 0.0
        %655 = vmatpush2.xpose.msra.mxu0 0.0
        %656 = vmatprep.subr.mxu0 0.0
        %657 = vmatpush2.xpose.msra.mxu0 0.0
        %658 = vmatprep.subr.mxu0 0.0
        %659 = vmatpush2.xpose.msra.mxu0 0.0
        %660 = vmatprep.subr.mxu0 0.0
        %661 = vmatpush2.xpose.msra.mxu0 0.0
        %662 = vmatprep.subr.mxu0 0.0
        %663 = vmatpush2.xpose.msra.mxu0 0.0
        %664 = vmatprep.subr.mxu0 0.0
        %665 = vmatpush2.xpose.msra.mxu0 0.0
        %666 = vmatprep.subr.mxu0 0.0
        %667 = vmatpush2.xpose.msra.mxu0 0.0
        %668 = vmatprep.subr.mxu0 0.0
        %669 = vmatpush2.xpose.msra.mxu0 0.0
        %670 = vmatprep.subr.mxu0 0.0
        %671 = vmatpush2.xpose.msra.mxu0 0.0
        %672 = vmatprep.subr.mxu0 0.0
        %673 = vmatpush2.xpose.msra.mxu0 0.0
        %674 = vmatprep.subr.mxu0 0.0
        %675 = vmatpush2.xpose.msra.mxu0 0.0
        %676 = vmatprep.subr.mxu0 0.0
        %677 = vmatpush2.xpose.msra.mxu0 0.0
        %678 = vmatprep.mubr.f32.mxu0 0.0
        %679 = vmatmul.mubr.f32.gmra.mxu0 %v605
        %v680 = vpop.f32.mrf.mxu0
        %v681 = vadd.f32 %v292, %v680
        %v682 = vpop.f32.mrf.mxu0
        %683 = vmatprep.mubr.f32.mxu0 0.0
        %684 = vmatmul.mubr.f32.gmra.mxu0 %v608
        %v685 = vpop.f32.mrf.mxu0
        %v686 = vadd.f32 %v293, %v685
        %v687 = vpop.f32.mrf.mxu0
        %688 = vdwg.mxu0
        %v689 = vsel %vm206, %v681, -inf
        %690 = vmax.xlane.f32.xlu0 %v689
        %v691 = vpop.xlane.xlu0 %690
        %v692 = vsel %vm206, %v686, -inf
        %693 = vmax.xlane.f32.xlu0 %v692
        %v694 = vpop.xlane.xlu0 %693
        %v695 = vsub.f32 %v681, %v691
        %v696 = vsub.f32 %v686, %v694
        %v697 = vmul.f32 %v695, 1.442695
        %v698 = vpow.pop %v697
        %v699 = vmul.f32 %v696, 1.442695
        %v700 = vpow.pop %v699
        %v701 = vmul.f32 %v698, %v179
        %v702 = vmul.f32 %v700, %v180
        %v703 = vsel %vm206, %v701, 0.0
        %704 = vadd.xlane.f32.xlu0 %v703
        %v705 = vpop.xlane.xlu0 %704
        %v706 = vsel %vm206, %v702, 0.0
        %707 = vadd.xlane.f32.xlu0 %v706
        %v708 = vpop.xlane.xlu0 %707
        %vm709 = vcmp.gt.f32.partialorder %v705, 0.0
        %vm710 = vcmp.gt.f32.partialorder %v708, 0.0
        %v711 = vsel %vm709, %v705, 1.0
        %v712 = vsel %vm710, %v708, 1.0
        %v713 = vrcp.pop %v711
        %v714 = vrcp.pop %v712
        %715 = vrot.lane.b32.xlu0 %v587, 64
        %v716 = vpop.permute.xlu0 %715
        %717 = vrot.lane.b32.xlu0 %v592, 64
        %v718 = vpop.permute.xlu0 %717
        %v722 = vsel %vm206, %v701, 0
        %v725 = vsel %vm206, %v702, 0
        %727 = vmatprep.subr.mxu0 0.0
        %728 = vmatpush1.msra.mxu0 0.0
        %729 = vmatprep.subr.mxu0 0.0
        %730 = vmatpush1.msra.mxu0 0.0
        %731 = vmatprep.subr.mxu0 0.0
        %732 = vmatpush1.msra.mxu0 0.0
        %733 = vmatprep.subr.mxu0 0.0
        %734 = vmatpush1.msra.mxu0 0.0
        %735 = vmatprep.subr.mxu0 0.0
        %736 = vmatpush1.msra.mxu0 0.0
        %737 = vmatprep.subr.mxu0 0.0
        %738 = vmatpush1.msra.mxu0 0.0
        %739 = vmatprep.subr.mxu0 0.0
        %740 = vmatpush1.msra.mxu0 0.0
        %741 = vmatprep.subr.mxu0 0.0
        %742 = vmatpush1.msra.mxu0 0.0
        %743 = vmatprep.subr.mxu0 0.0
        %744 = vmatpush1.msra.mxu0 0.0
        %745 = vmatprep.subr.mxu0 0.0
        %746 = vmatpush1.msra.mxu0 0.0
        %747 = vmatprep.subr.mxu0 0.0
        %748 = vmatpush1.msra.mxu0 0.0
        %749 = vmatprep.subr.mxu0 0.0
        %750 = vmatpush1.msra.mxu0 0.0
        %751 = vmatprep.subr.mxu0 0.0
        %752 = vmatpush1.msra.mxu0 0.0
        %753 = vmatprep.subr.mxu0 0.0
        %754 = vmatpush1.msra.mxu0 0.0
        %755 = vmatprep.subr.mxu0 0.0
        %756 = vmatpush1.msra.mxu0 %v718
        %757 = vmatprep.subr.mxu0 0.0
        %758 = vmatpush1.msra.mxu0 %v716
        %759 = vmatprep.subr.mxu0 0.0
        %760 = vmatpush2.msra.mxu0 0.0
        %761 = vmatprep.subr.mxu0 0.0
        %762 = vmatpush2.msra.mxu0 0.0
        %763 = vmatprep.subr.mxu0 0.0
        %764 = vmatpush2.msra.mxu0 0.0
        %765 = vmatprep.subr.mxu0 0.0
        %766 = vmatpush2.msra.mxu0 0.0
        %767 = vmatprep.subr.mxu0 0.0
        %768 = vmatpush2.msra.mxu0 0.0
        %769 = vmatprep.subr.mxu0 0.0
        %770 = vmatpush2.msra.mxu0 0.0
        %771 = vmatprep.subr.mxu0 0.0
        %772 = vmatpush2.msra.mxu0 0.0
        %773 = vmatprep.subr.mxu0 0.0
        %774 = vmatpush2.msra.mxu0 0.0
        %775 = vmatprep.subr.mxu0 0.0
        %776 = vmatpush2.msra.mxu0 0.0
        %777 = vmatprep.subr.mxu0 0.0
        %778 = vmatpush2.msra.mxu0 0.0
        %779 = vmatprep.subr.mxu0 0.0
        %780 = vmatpush2.msra.mxu0 0.0
        %781 = vmatprep.subr.mxu0 0.0
        %782 = vmatpush2.msra.mxu0 0.0
        %783 = vmatprep.subr.mxu0 0.0
        %784 = vmatpush2.msra.mxu0 0.0
        %785 = vmatprep.subr.mxu0 0.0
        %786 = vmatpush2.msra.mxu0 0.0
        %787 = vmatprep.subr.mxu0 0.0
        %788 = vmatpush2.msra.mxu0 0.0
        %789 = vmatprep.subr.mxu0 0.0
        %790 = vmatpush2.msra.mxu0 0.0
        %791 = vmatprep.mubr.f32.mxu0 0.0
        %792 = vmatmul.mubr.f32.gmra.mxu0 %v722
        %v793 = vpop.f32.mrf.mxu0
        %v794 = vadd.f32 0.0, %v793
        %v795 = vpop.f32.mrf.mxu0
        %796 = vmatprep.mubr.f32.mxu0 0.0
        %797 = vmatmul.mubr.f32.gmra.mxu0 %v725
        %v798 = vpop.f32.mrf.mxu0
        %v799 = vadd.f32 0.0, %v798
        %v800 = vpop.f32.mrf.mxu0
        %801 = vdwg.mxu0
        %v802 = vmul.f32 %v794, %v713
        %v803 = vmul.f32 %v799, %v714
        %804 = vrot.lane.b32.xlu0 %v587, 32
        %v805 = vpop.permute.xlu0 %804
        %806 = vrot.lane.b32.xlu0 %v592, 32
        %v807 = vpop.permute.xlu0 %806
        %v810 = vadd.f32 %v802, %v805
        %v811 = vadd.f32 %v803, %v807
        %v812 = vmax.f32 %v810, 0.0
        %v813 = vmax.f32 %v811, 0.0
        %v815 = vsel %vm206, %v181, 0
        %817 = vmatprep.subr.mxu0 0.0
        %818 = vmatpush1.msra.mxu0 0.0
        %819 = vmatprep.subr.mxu0 0.0
        %820 = vmatpush1.msra.mxu0 0.0
        %821 = vmatprep.subr.mxu0 0.0
        %822 = vmatpush1.msra.mxu0 0.0
        %823 = vmatprep.subr.mxu0 0.0
        %824 = vmatpush1.msra.mxu0 0.0
        %825 = vmatprep.subr.mxu0 0.0
        %826 = vmatpush1.msra.mxu0 0.0
        %827 = vmatprep.subr.mxu0 0.0
        %828 = vmatpush1.msra.mxu0 0.0
        %829 = vmatprep.subr.mxu0 0.0
        %830 = vmatpush1.msra.mxu0 0.0
        %831 = vmatprep.subr.mxu0 0.0
        %832 = vmatpush1.msra.mxu0 0.0
        %833 = vmatprep.subr.mxu0 0.0
        %834 = vmatpush1.msra.mxu0 0.0
        %835 = vmatprep.subr.mxu0 0.0
        %836 = vmatpush1.msra.mxu0 0.0
        %837 = vmatprep.subr.mxu0 0.0
        %838 = vmatpush1.msra.mxu0 0.0
        %839 = vmatprep.subr.mxu0 0.0
        %840 = vmatpush1.msra.mxu0 0.0
        %841 = vmatprep.subr.mxu0 0.0
        %842 = vmatpush1.msra.mxu0 0.0
        %843 = vmatprep.subr.mxu0 0.0
        %844 = vmatpush1.msra.mxu0 0.0
        %845 = vmatprep.subr.mxu0 0.0
        %846 = vmatpush1.msra.mxu0 %v813
        %847 = vmatprep.subr.mxu0 0.0
        %848 = vmatpush1.msra.mxu0 %v812
        %849 = vmatprep.subr.mxu0 0.0
        %850 = vmatpush2.msra.mxu0 0.0
        %851 = vmatprep.subr.mxu0 0.0
        %852 = vmatpush2.msra.mxu0 0.0
        %853 = vmatprep.subr.mxu0 0.0
        %854 = vmatpush2.msra.mxu0 0.0
        %855 = vmatprep.subr.mxu0 0.0
        %856 = vmatpush2.msra.mxu0 0.0
        %857 = vmatprep.subr.mxu0 0.0
        %858 = vmatpush2.msra.mxu0 0.0
        %859 = vmatprep.subr.mxu0 0.0
        %860 = vmatpush2.msra.mxu0 0.0
        %861 = vmatprep.subr.mxu0 0.0
        %862 = vmatpush2.msra.mxu0 0.0
        %863 = vmatprep.subr.mxu0 0.0
        %864 = vmatpush2.msra.mxu0 0.0
        %865 = vmatprep.subr.mxu0 0.0
        %866 = vmatpush2.msra.mxu0 0.0
        %867 = vmatprep.subr.mxu0 0.0
        %868 = vmatpush2.msra.mxu0 0.0
        %869 = vmatprep.subr.mxu0 0.0
        %870 = vmatpush2.msra.mxu0 0.0
        %871 = vmatprep.subr.mxu0 0.0
        %872 = vmatpush2.msra.mxu0 0.0
        %873 = vmatprep.subr.mxu0 0.0
        %874 = vmatpush2.msra.mxu0 0.0
        %875 = vmatprep.subr.mxu0 0.0
        %876 = vmatpush2.msra.mxu0 0.0
        %877 = vmatprep.subr.mxu0 0.0
        %878 = vmatpush2.msra.mxu0 0.0
        %879 = vmatprep.subr.mxu0 0.0
        %880 = vmatpush2.msra.mxu0 0.0
        %881 = vmatprep.mubr.f32.mxu0 0.0
        %882 = vmatmul.mubr.f32.gmra.mxu0 %v815
        %v883 = vpop.f32.mrf.mxu0
        %v884 = vadd.f32 0.0, %v883
        %v885 = vpop.f32.mrf.mxu0
        %886 = vdwg.mxu0
        %v887 = vlaneseq
        %v888 = vshrl.u32 %v887, 7
        %v889 = vsub.s32 0, %v888
        %v890 = vrot.slane %v200, %v889
        %v892 = vsel %vm603, %v884, 0
        %894 = vmatprep.subr.mxu0 0.0
        %895 = vmatpush1.msra.mxu0 0.0
        %896 = vmatprep.subr.mxu0 0.0
        %897 = vmatpush1.msra.mxu0 0.0
        %898 = vmatprep.subr.mxu0 0.0
        %899 = vmatpush1.msra.mxu0 0.0
        %900 = vmatprep.subr.mxu0 0.0
        %901 = vmatpush1.msra.mxu0 0.0
        %902 = vmatprep.subr.mxu0 0.0
        %903 = vmatpush1.msra.mxu0 0.0
        %904 = vmatprep.subr.mxu0 0.0
        %905 = vmatpush1.msra.mxu0 0.0
        %906 = vmatprep.subr.mxu0 0.0
        %907 = vmatpush1.msra.mxu0 0.0
        %908 = vmatprep.subr.mxu0 0.0
        %909 = vmatpush1.msra.mxu0 0.0
        %910 = vmatprep.subr.mxu0 0.0
        %911 = vmatpush1.msra.mxu0 0.0
        %912 = vmatprep.subr.mxu0 0.0
        %913 = vmatpush1.msra.mxu0 0.0
        %914 = vmatprep.subr.mxu0 0.0
        %915 = vmatpush1.msra.mxu0 0.0
        %916 = vmatprep.subr.mxu0 0.0
        %917 = vmatpush1.msra.mxu0 0.0
        %918 = vmatprep.subr.mxu0 0.0
        %919 = vmatpush1.msra.mxu0 %v189
        %920 = vmatprep.subr.mxu0 0.0
        %921 = vmatpush1.msra.mxu0 %v188
        %922 = vmatprep.subr.mxu0 0.0
        %923 = vmatpush1.msra.mxu0 %v187
        %924 = vmatprep.subr.mxu0 0.0
        %925 = vmatpush1.msra.mxu0 %v186
        %926 = vmatprep.subr.mxu0 0.0
        %927 = vmatpush2.msra.mxu0 0.0
        %928 = vmatprep.subr.mxu0 0.0
        %929 = vmatpush2.msra.mxu0 0.0
        %930 = vmatprep.subr.mxu0 0.0
        %931 = vmatpush2.msra.mxu0 0.0
        %932 = vmatprep.subr.mxu0 0.0
        %933 = vmatpush2.msra.mxu0 0.0
        %934 = vmatprep.subr.mxu0 0.0
        %935 = vmatpush2.msra.mxu0 0.0
        %936 = vmatprep.subr.mxu0 0.0
        %937 = vmatpush2.msra.mxu0 0.0
        %938 = vmatprep.subr.mxu0 0.0
        %939 = vmatpush2.msra.mxu0 0.0
        %940 = vmatprep.subr.mxu0 0.0
        %941 = vmatpush2.msra.mxu0 0.0
        %942 = vmatprep.subr.mxu0 0.0
        %943 = vmatpush2.msra.mxu0 0.0
        %944 = vmatprep.subr.mxu0 0.0
        %945 = vmatpush2.msra.mxu0 0.0
        %946 = vmatprep.subr.mxu0 0.0
        %947 = vmatpush2.msra.mxu0 0.0
        %948 = vmatprep.subr.mxu0 0.0
        %949 = vmatpush2.msra.mxu0 0.0
        %950 = vmatprep.subr.mxu0 0.0
        %951 = vmatpush2.msra.mxu0 0.0
        %952 = vmatprep.subr.mxu0 0.0
        %953 = vmatpush2.msra.mxu0 0.0
        %954 = vmatprep.subr.mxu0 0.0
        %955 = vmatpush2.msra.mxu0 0.0
        %956 = vmatprep.subr.mxu0 0.0
        %957 = vmatpush2.msra.mxu0 0.0
        %958 = vmatprep.mubr.f32.mxu0 0.0
        %959 = vmatmul.mubr.f32.gmra.mxu0 %v892
        %v960 = vpop.f32.mrf.mxu0
        %v961 = vadd.f32 %v890, %v960
        %v962 = vpop.f32.mrf.mxu0
        %963 = vdwg.mxu0
        %v964 = vmax.f32 %v961, 0.0
        %v965 = vlaneseq
        %v966 = vshrl.u32 %v965, 7
        %v967 = vsub.s32 0, %v966
        %v968 = vrot.slane %v201, %v967
        %vm969 = vcmask 523264
        %v971 = vsel %vm969, %v964, 0
        %973 = vmatprep.subr.mxu0 0.0
        %974 = vmatpush1.msra.mxu0 0.0
        %975 = vmatprep.subr.mxu0 0.0
        %976 = vmatpush1.msra.mxu0 0.0
        %977 = vmatprep.subr.mxu0 0.0
        %978 = vmatpush1.msra.mxu0 0.0
        %979 = vmatprep.subr.mxu0 0.0
        %980 = vmatpush1.msra.mxu0 0.0
        %981 = vmatprep.subr.mxu0 0.0
        %982 = vmatpush1.msra.mxu0 0.0
        %983 = vmatprep.subr.mxu0 0.0
        %984 = vmatpush1.msra.mxu0 0.0
        %985 = vmatprep.subr.mxu0 0.0
        %986 = vmatpush1.msra.mxu0 0.0
        %987 = vmatprep.subr.mxu0 0.0
        %988 = vmatpush1.msra.mxu0 0.0
        %989 = vmatprep.subr.mxu0 0.0
        %990 = vmatpush1.msra.mxu0 %v197
        %991 = vmatprep.subr.mxu0 0.0
        %992 = vmatpush1.msra.mxu0 %v196
        %993 = vmatprep.subr.mxu0 0.0
        %994 = vmatpush1.msra.mxu0 %v195
        %995 = vmatprep.subr.mxu0 0.0
        %996 = vmatpush1.msra.mxu0 %v194
        %997 = vmatprep.subr.mxu0 0.0
        %998 = vmatpush1.msra.mxu0 %v193
        %999 = vmatprep.subr.mxu0 0.0
        %1000 = vmatpush1.msra.mxu0 %v192
        %1001 = vmatprep.subr.mxu0 0.0
        %1002 = vmatpush1.msra.mxu0 %v191
        %1003 = vmatprep.subr.mxu0 0.0
        %1004 = vmatpush1.msra.mxu0 %v190
        %1005 = vmatprep.subr.mxu0 0.0
        %1006 = vmatpush2.msra.mxu0 0.0
        %1007 = vmatprep.subr.mxu0 0.0
        %1008 = vmatpush2.msra.mxu0 0.0
        %1009 = vmatprep.subr.mxu0 0.0
        %1010 = vmatpush2.msra.mxu0 0.0
        %1011 = vmatprep.subr.mxu0 0.0
        %1012 = vmatpush2.msra.mxu0 0.0
        %1013 = vmatprep.subr.mxu0 0.0
        %1014 = vmatpush2.msra.mxu0 0.0
        %1015 = vmatprep.subr.mxu0 0.0
        %1016 = vmatpush2.msra.mxu0 0.0
        %1017 = vmatprep.subr.mxu0 0.0
        %1018 = vmatpush2.msra.mxu0 0.0
        %1019 = vmatprep.subr.mxu0 0.0
        %1020 = vmatpush2.msra.mxu0 0.0
        %1021 = vmatprep.subr.mxu0 0.0
        %1022 = vmatpush2.msra.mxu0 0.0
        %1023 = vmatprep.subr.mxu0 0.0
        %1024 = vmatpush2.msra.mxu0 0.0
        %1025 = vmatprep.subr.mxu0 0.0
        %1026 = vmatpush2.msra.mxu0 0.0
        %1027 = vmatprep.subr.mxu0 0.0
        %1028 = vmatpush2.msra.mxu0 0.0
        %1029 = vmatprep.subr.mxu0 0.0
        %1030 = vmatpush2.msra.mxu0 0.0
        %1031 = vmatprep.subr.mxu0 0.0
        %1032 = vmatpush2.msra.mxu0 0.0
        %1033 = vmatprep.subr.mxu0 0.0
        %1034 = vmatpush2.msra.mxu0 0.0
        %1035 = vmatprep.subr.mxu0 0.0
        %1036 = vmatpush2.msra.mxu0 0.0
        %1037 = vmatprep.mubr.f32.mxu0 0.0
        %1038 = vmatmul.mubr.f32.gmra.mxu0 %v971
        %v1039 = vpop.f32.mrf.mxu0
        %v1040 = vadd.f32 %v968, %v1039
        %v1041 = vpop.f32.mrf.mxu0
        %1042 = vdwg.mxu0
        %v1043 = vxor.u32 %v1040, 2147483648
        %v1044 = vmul.f32 %v1043, 1.442695
        %v1045 = vpow.pop %v1044
        %v1046 = vadd.f32 %v1045, 1.0
        %v1047 = vrcp.pop %v1046
        %v1048 = vmul.f32 1.0, %v1047
        %1049 = vst [vmem:[%s176] sm:$0xff] %v1048
        %s1050 = sand.u32 %s75, 1
        %s1051 = scalar_lea.sflag [#allocation4], %s1050
        %s1052 = sand.u32 %s75, 1
        %s1053 = smul.addr %s1052, 8
        %s1054 = scalar_lea.vmem [#allocation7], %s1053
        // Predicated region
        $region37: #{tpu_custom_call.1} parent=27 // pred_check
          %p1055 = pneg %p85
        $region38: #{tpu_custom_call.1} parent=27 // pred_check_branch
          %1057 = sbr.rel (%p1055) target = $region40
        $region39: #{tpu_custom_call.1} parent=27 // pred_region
          %s1059 = ssub.s32 128, 128
          %1060 = vsyncadd %s1051, %s1059
          %s1061 = smul.addr %s20, 128
          %s1062 = scalar_lea.hbm %s2, %s1061
          %s1064 = sshll.u32 %s1054, 4
          %s1065 = int_to_ptr.vmem [resolvable:$true] %s1064
          %1067 = dma.vmem_to_hbm [thread:$0]  %s1065, 128, %s1062, %s1051
        $region40: #{tpu_custom_call.1} parent=27 // pred_fallthru
          _
      $region28: #{tpu_custom_call.1} parent=5 // pred_fallthru
        _
      %p1068 = scmp.le.s32.totalorder 2, %s15
      // Predicated region
      $region41: #{tpu_custom_call.1} parent=5 // pred_check
        %p1069 = pneg %p1068
      $region42: #{tpu_custom_call.1} parent=5 // pred_check_branch
        %1071 = sbr.rel (%p1069) target = $region44
      $region43: #{tpu_custom_call.1} parent=5 // pred_region
        %s1072 = ssub.s32 %s15, 2
        // Predicated region
        $region45: #{tpu_custom_call.1} parent=43 // pred_check
          %p1073 = pneg %p91
        $region46: #{tpu_custom_call.1} parent=43 // pred_check_branch
          %1075 = sbr.rel (%p1073) target = $region48
        $region47: #{tpu_custom_call.1} parent=43 // pred_region
          %s1076 = sand.u32 %s76, 1
          %s1077 = scalar_lea.sflag [#allocation4], %s1076
          %s1078 = sand.u32 %s76, 1
          %s1079 = smul.addr %s1078, 8
          %s1080 = scalar_lea.vmem [#allocation7], %s1079
          %1081 = dma.done %s1077, 128
        $region48: #{tpu_custom_call.1} parent=43 // pred_fallthru
          _
      $region44: #{tpu_custom_call.1} parent=5 // pred_fallthru
        _
    $region6: #{tpu_custom_call.1} parent=1 // loop_footer
      %s19 = sadd.s32 1, %s15
    $region7: #{tpu_custom_call.1} parent=1 // loop_footer_branch
      %14 = sbr.rel target = $region3
    $region8: #{tpu_custom_call.1} parent=1 // loop_exit
      _
    %1082 = vsyncpa [#allocation3], 1
    %s1083 = scalar_lea.sflag [#allocation3], 1
    %1084 = vsyncpa %s1083, 1
    %1085 = vsyncpa [#allocation6], 1
    %1086 = vsyncpa [#allocation4], 1
    %s1087 = scalar_lea.sflag [#allocation4], 1
    %1088 = vsyncpa %s1087, 1

</llo_original>
